<compile_context>
chip_gen: v6e
topology: v6e:2x2x1
jax: 0.10.0
libtpu: 0.0.40
codegen_flags: <defaults>
</compile_context>

<pallas_src>
import jax
import jax.numpy as jnp
from jax.experimental import pallas as pl
from jax.experimental.pallas import tpu as pltpu

LANE = 128  # TPU lane width; tiny twin-head output is padded up to this for unmasked stores.


def _critic_twin_kernel(s_ref, a_ref, w1s_ref, w1a_ref, b1_ref,
                        w2_ref, b2_ref, w3_ref, b3_ref, out_ref):
    """Fused CriticTwin MLP on one batch tile.

    h = relu(state @ W1_s + action @ W1_a + b1)   # concat folded into two matmuls
    h = h @ W2 + b2                               # final ReLU deleted by build_mlp
    q = h @ W3_pad + b3_pad                       # [q1 | q2 | zero-pad] -> 128 lanes
    """
    h = jnp.dot(s_ref[...], w1s_ref[...], preferred_element_type=jnp.float32)
    h = h + jnp.dot(a_ref[...], w1a_ref[...], preferred_element_type=jnp.float32)
    h = jnp.maximum(h + b1_ref[...], 0.0)
    h = jnp.dot(h, w2_ref[...], preferred_element_type=jnp.float32) + b2_ref[...]
    q = jnp.dot(h, w3_ref[...], preferred_element_type=jnp.float32) + b3_ref[...]
    out_ref[...] = q.astype(out_ref.dtype)


def _choose_tile_b(batch, max_tile=1024):
    """Largest multiple-of-8 divisor of `batch` that is <= max_tile and leaves >= 2
    grid steps (v7x has 2 TensorCores sharing the parallel grid axis). Falls back to
    the full batch when it is not a multiple of 8 (full-extent blocks are always legal)."""
    if batch % 8 != 0 or batch <= 8:
        return batch
    best = 8
    t = 8
    limit = min(batch // 2, max_tile)
    while t <= limit:
        if batch % t == 0:
            best = t
        t += 8
    return best


def prepare_kernel_params(torch_params, state_dim, action_dim):
    """One-time host-side repack: split W1 by (state, action), pad twin heads to 128 lanes."""
    w1, b1, w2, b2, w3q1, b3q1, w3q2, b3q2 = torch_params
    D0 = w1.shape[1]
    D1 = w2.shape[1]
    assert 2 * action_dim <= LANE, "twin-head packing assumes 2*action_dim <= 128"
    w1s = w1[:state_dim, :]                       # [S, D0]
    w1a = w1[state_dim:, :]                       # [A, D0]
    w3 = jnp.zeros((D1, LANE), w3q1.dtype)
    w3 = w3.at[:, :action_dim].set(w3q1)
    w3 = w3.at[:, action_dim:2 * action_dim].set(w3q2)
    b3 = jnp.zeros((LANE,), b3q1.dtype)
    b3 = b3.at[:action_dim].set(b3q1)
    b3 = b3.at[action_dim:2 * action_dim].set(b3q2)
    return (w1s, w1a, b1.reshape(1, D0), w2, b2.reshape(1, D1), w3, b3.reshape(1, LANE))


def _critic_twin_padded(state, action, kparams, *, max_tile=1024):
    """Runs the fused kernel; returns a [B, 128] lane-dense slab: [q1 | q2 | zeros]."""
    w1s, w1a, b1, w2, b2, w3, b3 = kparams
    B, S = state.shape
    _, A = action.shape
    D0 = w1s.shape[1]
    D1 = w2.shape[1]

    tile_b = _choose_tile_b(B, max_tile)
    grid = (B // tile_b,)
    const = lambda i: (0, 0)   # weights/biases: same full block every step -> stay resident

    return pl.pallas_call(
        _critic_twin_kernel,
        out_shape=jax.ShapeDtypeStruct((B, LANE), state.dtype),
        grid_spec=pltpu.PrefetchScalarGridSpec(
            num_scalar_prefetch=0,
            grid=grid,
            in_specs=[
                pl.BlockSpec((tile_b, S), lambda i: (i, 0)),   # state tile
                pl.BlockSpec((tile_b, A), lambda i: (i, 0)),   # action tile
                pl.BlockSpec((S, D0), const),                  # W1_s
                pl.BlockSpec((A, D0), const),                  # W1_a
                pl.BlockSpec((1, D0), const),                  # b1
                pl.BlockSpec((D0, D1), const),                 # W2
                pl.BlockSpec((1, D1), const),                  # b2
                pl.BlockSpec((D1, LANE), const),               # W3 (q1|q2 packed, zero-padded)
                pl.BlockSpec((1, LANE), const),                # b3 packed
            ],
            out_specs=pl.BlockSpec((tile_b, LANE), lambda i: (i, 0)),
        ),
        compiler_params=pltpu.CompilerParams(
            dimension_semantics=("parallel",)),
    )(state, action, w1s, w1a, b1, w2, b2, w3, b3)


def critic_twin_forward(state, action, kparams, action_dim):
    """CriticTwin.forward: q1 only."""
    q = _critic_twin_padded(state, action, kparams)
    return q[:, :action_dim]


def critic_twin_get_q1_q2(state, action, kparams, action_dim):
    """CriticTwin.get_q1_q2: (q1, q2) from one fused kernel call."""
    q = _critic_twin_padded(state, action, kparams)
    return q[:, :action_dim], q[:, action_dim:2 * action_dim]


def init_params(key, state_dim, action_dim, dims):
    """PyTorch-Linear-style init (uniform +-1/sqrt(fan_in)); weights stored as [in, out]."""
    assert len(dims) == 2, "kernel is specialized to the 2-layer enc_sa used by this module"
    layer_dims = [(state_dim + action_dim, dims[0]), (dims[0], dims[1]),
                  (dims[1], action_dim), (dims[1], action_dim)]   # enc_sa x2, dec_q1, dec_q2
    params = []
    for fan_in, fan_out in layer_dims:
        key, kw, kb = jax.random.split(key, 3)
        bound = 1.0 / (fan_in ** 0.5)
        w = jax.random.uniform(kw, (fan_in, fan_out), jnp.float32, -bound, bound)
        b = jax.random.uniform(kb, (fan_out,), jnp.float32, -bound, bound)
        params.extend([w, b])
    return tuple(params)   # (w1, b1, w2, b2, w3_q1, b3_q1, w3_q2, b3_q2)


def _reference_q1_q2(state, action, params):
    w1, b1, w2, b2, w3q1, b3q1, w3q2, b3q2 = params
    sa = jnp.concatenate([state, action], axis=1)
    h = jnp.maximum(sa @ w1 + b1, 0.0)
    h = h @ w2 + b2
    return h @ w3q1 + b3q1, h @ w3q2 + b3q2


if __name__ == "__main__":
    # Small shapes consistent with the module: dims=(32, 32)
    batch, state_dim, action_dim = 16, 16, 4
    dims = (32, 32)

    key = jax.random.PRNGKey(0)
    k_s, k_a, k_p = jax.random.split(key, 3)
    state = jax.random.normal(k_s, (batch, state_dim), jnp.float32)
    action = jax.random.normal(k_a, (batch, action_dim), jnp.float32)

    params = init_params(k_p, state_dim, action_dim, dims)
    kparams = prepare_kernel_params(params, state_dim, action_dim)

    # forward() path (q1 only)
    q1 = critic_twin_forward(state, action, kparams, action_dim)
    q1 = jax.block_until_ready(q1)

    # get_q1_q2() path (fused twin heads, same kernel)
    q1_t, q2_t = critic_twin_get_q1_q2(state, action, kparams, action_dim)
    q1_t, q2_t = jax.block_until_ready((q1_t, q2_t))

    ref_q1, ref_q2 = _reference_q1_q2(state, action, params)
    assert q1.shape == (batch, action_dim)
    assert jnp.allclose(q1, ref_q1, atol=1e-5, rtol=1e-5)
    assert jnp.allclose(q1_t, ref_q1, atol=1e-5, rtol=1e-5)
    assert jnp.allclose(q2_t, ref_q2, atol=1e-5, rtol=1e-5)

    print("KERNEL_OK")
</pallas_src>

<mosaic_0001>
module attributes {stable_mosaic.version = 11 : i64} {
  func.func @_critic_twin_kernel(%arg0: i32, %arg1: memref<8x16xf32, #tpu.memory_space<vmem>>, %arg2: memref<8x4xf32, #tpu.memory_space<vmem>>, %arg3: memref<16x32xf32, #tpu.memory_space<vmem>>, %arg4: memref<4x32xf32, #tpu.memory_space<vmem>>, %arg5: memref<1x32xf32, #tpu.memory_space<vmem>>, %arg6: memref<32x32xf32, #tpu.memory_space<vmem>>, %arg7: memref<1x32xf32, #tpu.memory_space<vmem>>, %arg8: memref<32x128xf32, #tpu.memory_space<vmem>>, %arg9: memref<1x128xf32, #tpu.memory_space<vmem>>, %arg10: memref<8x128xf32, #tpu.memory_space<vmem>>) attributes {dimension_semantics = [#tpu.dimension_semantics<parallel>], iteration_bounds = array<i64: 2>, scalar_prefetch = 0 : i64, scratch_operands = 0 : i64, tpu.core_type = #tpu.core_type<tc>, window_params = [{transform_indices = @transform_0, window_bounds = array<i64: 8, 16>}, {transform_indices = @transform_1, window_bounds = array<i64: 8, 4>}, {pipeline_mode = #tpu.pipeline_mode<synchronous>, transform_indices = @transform_2, window_bounds = array<i64: 16, 32>}, {pipeline_mode = #tpu.pipeline_mode<synchronous>, transform_indices = @transform_3, window_bounds = array<i64: 4, 32>}, {pipeline_mode = #tpu.pipeline_mode<synchronous>, transform_indices = @transform_4, window_bounds = array<i64: 1, 32>}, {pipeline_mode = #tpu.pipeline_mode<synchronous>, transform_indices = @transform_5, window_bounds = array<i64: 32, 32>}, {pipeline_mode = #tpu.pipeline_mode<synchronous>, transform_indices = @transform_6, window_bounds = array<i64: 1, 32>}, {pipeline_mode = #tpu.pipeline_mode<synchronous>, transform_indices = @transform_7, window_bounds = array<i64: 32, 128>}, {pipeline_mode = #tpu.pipeline_mode<synchronous>, transform_indices = @transform_8, window_bounds = array<i64: 1, 128>}, {transform_indices = @transform_9, window_bounds = array<i64: 8, 128>}]} {
    %c0 = arith.constant 0 : index
    %c0_0 = arith.constant 0 : index
    %0 = vector.load %arg1[%c0, %c0_0] : memref<8x16xf32, #tpu.memory_space<vmem>>, vector<8x16xf32>
    %c0_1 = arith.constant 0 : index
    %c0_2 = arith.constant 0 : index
    %1 = vector.load %arg3[%c0_1, %c0_2] : memref<16x32xf32, #tpu.memory_space<vmem>>, vector<16x32xf32>
    %cst = arith.constant dense<0.000000e+00> : vector<8x32xf32>
    %2 = tpu.matmul %0, %1, %cst {dimension_numbers = #tpu.dot_dimension_numbers<[1], [0], [0], [1], [0, 0, 1, 1], [], []>} : vector<8x16xf32>, vector<16x32xf32>, vector<8x32xf32> -> vector<8x32xf32>
    %c0_3 = arith.constant 0 : index
    %c0_4 = arith.constant 0 : index
    %3 = vector.load %arg2[%c0_3, %c0_4] : memref<8x4xf32, #tpu.memory_space<vmem>>, vector<8x4xf32>
    %c0_5 = arith.constant 0 : index
    %c0_6 = arith.constant 0 : index
    %4 = vector.load %arg4[%c0_5, %c0_6] : memref<4x32xf32, #tpu.memory_space<vmem>>, vector<4x32xf32>
    %cst_7 = arith.constant dense<0.000000e+00> : vector<8x32xf32>
    %5 = tpu.matmul %3, %4, %cst_7 {dimension_numbers = #tpu.dot_dimension_numbers<[1], [0], [0], [1], [0, 0, 1, 1], [], []>} : vector<8x4xf32>, vector<4x32xf32>, vector<8x32xf32> -> vector<8x32xf32>
    %6 = arith.addf %2, %5 : vector<8x32xf32>
    %c0_8 = arith.constant 0 : index
    %c0_9 = arith.constant 0 : index
    %7 = vector.load %arg5[%c0_8, %c0_9] : memref<1x32xf32, #tpu.memory_space<vmem>>, vector<1x32xf32>
    %8 = vector.broadcast %7 : vector<1x32xf32> to vector<8x32xf32>
    %9 = arith.addf %6, %8 : vector<8x32xf32>
    %cst_10 = arith.constant 0.000000e+00 : f32
    %10 = vector.broadcast %cst_10 : f32 to vector<8x32xf32>
    %11 = arith.maximumf %9, %10 : vector<8x32xf32>
    %c0_11 = arith.constant 0 : index
    %c0_12 = arith.constant 0 : index
    %12 = vector.load %arg6[%c0_11, %c0_12] : memref<32x32xf32, #tpu.memory_space<vmem>>, vector<32x32xf32>
    %cst_13 = arith.constant dense<0.000000e+00> : vector<8x32xf32>
    %13 = tpu.matmul %11, %12, %cst_13 {dimension_numbers = #tpu.dot_dimension_numbers<[1], [0], [0], [1], [0, 0, 1, 1], [], []>} : vector<8x32xf32>, vector<32x32xf32>, vector<8x32xf32> -> vector<8x32xf32>
    %c0_14 = arith.constant 0 : index
    %c0_15 = arith.constant 0 : index
    %14 = vector.load %arg7[%c0_14, %c0_15] : memref<1x32xf32, #tpu.memory_space<vmem>>, vector<1x32xf32>
    %15 = vector.broadcast %14 : vector<1x32xf32> to vector<8x32xf32>
    %16 = arith.addf %13, %15 : vector<8x32xf32>
    %c0_16 = arith.constant 0 : index
    %c0_17 = arith.constant 0 : index
    %17 = vector.load %arg8[%c0_16, %c0_17] : memref<32x128xf32, #tpu.memory_space<vmem>>, vector<32x128xf32>
    %cst_18 = arith.constant dense<0.000000e+00> : vector<8x128xf32>
    %18 = tpu.matmul %16, %17, %cst_18 {dimension_numbers = #tpu.dot_dimension_numbers<[1], [0], [0], [1], [0, 0, 1, 1], [], []>} : vector<8x32xf32>, vector<32x128xf32>, vector<8x128xf32> -> vector<8x128xf32>
    %c0_19 = arith.constant 0 : index
    %c0_20 = arith.constant 0 : index
    %19 = vector.load %arg9[%c0_19, %c0_20] : memref<1x128xf32, #tpu.memory_space<vmem>>, vector<1x128xf32>
    %20 = vector.broadcast %19 : vector<1x128xf32> to vector<8x128xf32>
    %21 = arith.addf %18, %20 : vector<8x128xf32>
    %c0_21 = arith.constant 0 : index
    %c0_22 = arith.constant 0 : index
    %22 = vector.load %arg10[%c0_21, %c0_22] : memref<8x128xf32, #tpu.memory_space<vmem>>, vector<8x128xf32>
    tpu.vector_store %arg10[%c0_21, %c0_22], %21 {strides = array<i32>} : memref<8x128xf32, #tpu.memory_space<vmem>>, vector<8x128xf32>,
    return
  }
  func.func @transform_0(%arg0: i32) -> (i32, i32) {
    %c0_i32 = arith.constant 0 : i32
    %c0_i32_0 = arith.constant 0 : i32
    return %arg0, %c0_i32 : i32, i32
  }
  func.func @transform_1(%arg0: i32) -> (i32, i32) {
    %c0_i32 = arith.constant 0 : i32
    %c0_i32_0 = arith.constant 0 : i32
    return %arg0, %c0_i32 : i32, i32
  }
  func.func @transform_2(%arg0: i32) -> (i32, i32) {
    %c0_i32 = arith.constant 0 : i32
    %c0_i32_0 = arith.constant 0 : i32
    %c0_i32_1 = arith.constant 0 : i32
    return %c0_i32, %c0_i32_0 : i32, i32
  }
  func.func @transform_3(%arg0: i32) -> (i32, i32) {
    %c0_i32 = arith.constant 0 : i32
    %c0_i32_0 = arith.constant 0 : i32
    %c0_i32_1 = arith.constant 0 : i32
    return %c0_i32, %c0_i32_0 : i32, i32
  }
  func.func @transform_4(%arg0: i32) -> (i32, i32) {
    %c0_i32 = arith.constant 0 : i32
    %c0_i32_0 = arith.constant 0 : i32
    %c0_i32_1 = arith.constant 0 : i32
    return %c0_i32, %c0_i32_0 : i32, i32
  }
  func.func @transform_5(%arg0: i32) -> (i32, i32) {
    %c0_i32 = arith.constant 0 : i32
    %c0_i32_0 = arith.constant 0 : i32
    %c0_i32_1 = arith.constant 0 : i32
    return %c0_i32, %c0_i32_0 : i32, i32
  }
  func.func @transform_6(%arg0: i32) -> (i32, i32) {
    %c0_i32 = arith.constant 0 : i32
    %c0_i32_0 = arith.constant 0 : i32
    %c0_i32_1 = arith.constant 0 : i32
    return %c0_i32, %c0_i32_0 : i32, i32
  }
  func.func @transform_7(%arg0: i32) -> (i32, i32) {
    %c0_i32 = arith.constant 0 : i32
    %c0_i32_0 = arith.constant 0 : i32
    %c0_i32_1 = arith.constant 0 : i32
    return %c0_i32, %c0_i32_0 : i32, i32
  }
  func.func @transform_8(%arg0: i32) -> (i32, i32) {
    %c0_i32 = arith.constant 0 : i32
    %c0_i32_0 = arith.constant 0 : i32
    %c0_i32_1 = arith.constant 0 : i32
    return %c0_i32, %c0_i32_0 : i32, i32
  }
  func.func @transform_9(%arg0: i32) -> (i32, i32) {
    %c0_i32 = arith.constant 0 : i32
    %c0_i32_0 = arith.constant 0 : i32
    return %arg0, %c0_i32 : i32, i32
  }
}

</mosaic_0001>

<llo_original>
// kernel: tpu_custom_call.1
$region0: #{tpu_custom_call.1}
  #allocation0 [shape = 'u32[]', space=smem, size = 0x4, offset = 0x4, fixed_abs, tag = 'smem constant byte address 0x4 - core index']
  #allocation1 [shape = 'u32[144,128]{1,0:T(1,128)}', space=vmem, size = 0x12000, scoped, tag = 'internal scratch']
  %s0 = inlined_call_operand.hbm [shape: f32[16,16], index: 0, kind: input, shape index: {}]
  %s1 = inlined_call_operand.vmem [shape: f32[16,4], index: 1, kind: input, shape index: {}]
  %s2 = inlined_call_operand.hbm [shape: f32[16,32], index: 2, kind: input, shape index: {}]
  %s3 = inlined_call_operand.hbm [shape: f32[4,32], index: 3, kind: input, shape index: {}]
  %s4 = inlined_call_operand.hbm [shape: f32[1,32], index: 4, kind: input, shape index: {}]
  %s5 = inlined_call_operand.hbm [shape: f32[32,32], index: 5, kind: input, shape index: {}]
  %s6 = inlined_call_operand.hbm [shape: f32[1,32], index: 6, kind: input, shape index: {}]
  %s7 = inlined_call_operand.vmem [shape: f32[32,128], index: 7, kind: input, shape index: {}]
  %s8 = inlined_call_operand.vmem [shape: f32[1,128], index: 8, kind: input, shape index: {}]
  %s9 = inlined_call_operand.hbm [shape: f32[16,128], index: 9, kind: output, shape index: {}]
  %s10 = sld [smem:[#allocation0]]
  $region93: #{tpu_custom_call.1} parent=0
    _
  %s12 = ssub.s32 1, %s10
  %s13 = scalar_select 0, %s12, %s10
  $region1: #{tpu_custom_call.1} parent=0
    #allocation2 [shape = 'u8[8192]{0}', space=vmem, size = 0x2000, scoped, tag = 'input window, operand 0']
    #allocation3 [shape = 's32[2]{0}', space=sflag, size = 0x8, scoped, tag = 'scoped memory for tpu_custom_call.1']
    #allocation4 [shape = 's32[2]{0}', space=sflag, size = 0x8, scoped, tag = 'scoped memory for tpu_custom_call.1']
    #allocation5 [shape = 'u8[8192]{0}', space=vmem, size = 0x2000, scoped, tag = 'input window, operand 2, single buffered']
    #allocation6 [shape = 's32[1]{0}', space=sflag, size = 0x4, scoped, tag = 'scoped memory for tpu_custom_call.1']
    #allocation7 [shape = 'u8[2048]{0}', space=vmem, size = 0x800, scoped, tag = 'input window, operand 3, single buffered']
    #allocation8 [shape = 'u8[512]{0}', space=vmem, size = 0x400, scoped, tag = 'input window, operand 4, single buffered']
    #allocation9 [shape = 's32[1]{0}', space=sflag, size = 0x4, scoped, tag = 'scoped memory for tpu_custom_call.1']
    #allocation10 [shape = 'u8[16384]{0}', space=vmem, size = 0x4000, scoped, tag = 'input window, operand 5, single buffered']
    #allocation11 [shape = 'u8[512]{0}', space=vmem, size = 0x400, scoped, tag = 'input window, operand 6, single buffered']
    #allocation12 [shape = 's32[1]{0}', space=sflag, size = 0x4, scoped, tag = 'scoped memory for tpu_custom_call.1']
    #allocation13 [shape = 'u8[8192]{0}', space=vmem, size = 0x2000, scoped, tag = 'output window, operand 0']
    %14 = vsyncpa [#allocation3], 0
    %s15 = scalar_lea.sflag [#allocation3], 1
    %16 = vsyncpa %s15, 0
    %17 = vsyncpa [#allocation6], 0
    %18 = vsyncpa [#allocation9], 0
    %19 = vsyncpa [#allocation12], 0
    %20 = vsyncpa [#allocation4], 0
    %s21 = scalar_lea.sflag [#allocation4], 1
    %22 = vsyncpa %s21, 0
    loop: start=0, step=1, limit=4
    $region2: #{tpu_custom_call.1} parent=1 // loop_pre_header
      _
    $region3: #{tpu_custom_call.1} parent=1 // loop_header
      %s24 = sphi 0, %s28
      %p25 = scmp.ge.s32.totalorder %s24, 4
      %s34 = sphi 0, %s36
      %s37 = sphi 0, %s34
      %s38 = sphi 0, %s37
      %s54 = sphi 0, %s38
      %s60 = sphi 0, %s62
      %s63 = sphi 0, %s60
      %s64 = sphi 0, %s63
      %s80 = sphi 0, %s64
      %s84 = sphi 0, %s84
      %s86 = sphi 0, %s84
      %s87 = sphi 0, %s86
      %s101 = sphi 0, %s87
      %s105 = sphi 0, %s105
      %s107 = sphi 0, %s105
      %s108 = sphi 0, %s107
      %s122 = sphi 0, %s108
      %s126 = sphi 0, %s126
      %s128 = sphi 0, %s126
      %s129 = sphi 0, %s128
      %s143 = sphi 0, %s129
      %s147 = sphi 0, %s147
      %s149 = sphi 0, %s147
      %s150 = sphi 0, %s149
      %s164 = sphi 0, %s150
      %s168 = sphi 0, %s168
      %s170 = sphi 0, %s168
      %s171 = sphi 0, %s170
      %s185 = sphi 0, %s171
      %s189 = sphi 0, %s189
      %s191 = sphi 0, %s189
      %s192 = sphi 0, %s191
      %s206 = sphi 0, %s192
      %s210 = sphi 0, %s210
      %s212 = sphi 0, %s210
      %s213 = sphi 0, %s212
      %s227 = sphi 0, %s213
      %s233 = sphi 0, %s235
      %s236 = sphi 0, %s233
      %s237 = sphi 0, %s236
      %s253 = sphi 0, %s237
    $region4: #{tpu_custom_call.1} parent=1 // loop_header_branch
      %27 = sbr.rel (%p25) target = $region8
    $region5: #{tpu_custom_call.1} parent=1 // loop_body
      %s29 = ssub.s32 %s24, 1
      %s30 = ssub.s32 %s24, 2
      %s31 = sadd.s32 %s24, 1
      %s32 = ssub.s32 %s24, %s31
      %p33 = scmp.eq.s32.totalorder %s32, 0
      %s35 = sadd.s32 %s34, 1
      %s36 = scalar_select %p33, %s34, %s35
      %p39 = pneg %p33
      %p40 = scmp.eq.s32.totalorder %s24, 1
      %p41 = por %p39, %p40
      %p42 = scmp.ne.s32.totalorder %s34, %s37
      %p43 = scmp.eq.s32.totalorder %s24, 0
      %p44 = por %p42, %p43
      %p45 = scmp.ne.s32.totalorder %s34, %s37
      %p46 = scmp.eq.s32.totalorder %s29, 1
      %p47 = por %p45, %p46
      %p48 = scmp.ne.s32.totalorder %s37, %s38
      %p49 = scmp.eq.s32.totalorder %s29, 0
      %p50 = por %p48, %p49
      %p51 = scmp.ne.s32.totalorder %s37, %s38
      %p52 = scmp.eq.s32.totalorder %s30, 1
      %p53 = por %p51, %p52
      %p55 = scmp.ne.s32.totalorder %s38, %s54
      %p56 = scmp.eq.s32.totalorder %s30, 0
      %p57 = por %p55, %p56
      %s58 = ssub.s32 %s24, %s31
      %p59 = scmp.eq.s32.totalorder %s58, 0
      %s61 = sadd.s32 %s60, 1
      %s62 = scalar_select %p59, %s60, %s61
      %p65 = pneg %p59
      %p66 = scmp.eq.s32.totalorder %s24, 1
      %p67 = por %p65, %p66
      %p68 = scmp.ne.s32.totalorder %s60, %s63
      %p69 = scmp.eq.s32.totalorder %s24, 0
      %p70 = por %p68, %p69
      %p71 = scmp.ne.s32.totalorder %s60, %s63
      %p72 = scmp.eq.s32.totalorder %s29, 1
      %p73 = por %p71, %p72
      %p74 = scmp.ne.s32.totalorder %s63, %s64
      %p75 = scmp.eq.s32.totalorder %s29, 0
      %p76 = por %p74, %p75
      %p77 = scmp.ne.s32.totalorder %s63, %s64
      %p78 = scmp.eq.s32.totalorder %s30, 1
      %p79 = por %p77, %p78
      %p81 = scmp.ne.s32.totalorder %s64, %s80
      %p82 = scmp.eq.s32.totalorder %s30, 0
      %p83 = por %p81, %p82
      %s85 = sadd.s32 %s84, 1
      %p88 = scmp.eq.s32.totalorder %s24, 1
      %p89 = scmp.ne.s32.totalorder %s84, %s86
      %p90 = scmp.eq.s32.totalorder %s24, 0
      %p91 = por %p89, %p90
      %p92 = scmp.ne.s32.totalorder %s84, %s86
      %p93 = scmp.eq.s32.totalorder %s29, 1
      %p94 = por %p92, %p93
      %p95 = scmp.ne.s32.totalorder %s86, %s87
      %p96 = scmp.eq.s32.totalorder %s29, 0
      %p97 = por %p95, %p96
      %p98 = scmp.ne.s32.totalorder %s86, %s87
      %p99 = scmp.eq.s32.totalorder %s30, 1
      %p100 = por %p98, %p99
      %p102 = scmp.ne.s32.totalorder %s87, %s101
      %p103 = scmp.eq.s32.totalorder %s30, 0
      %p104 = por %p102, %p103
      %s106 = sadd.s32 %s105, 1
      %p109 = scmp.eq.s32.totalorder %s24, 1
      %p110 = scmp.ne.s32.totalorder %s105, %s107
      %p111 = scmp.eq.s32.totalorder %s24, 0
      %p112 = por %p110, %p111
      %p113 = scmp.ne.s32.totalorder %s105, %s107
      %p114 = scmp.eq.s32.totalorder %s29, 1
      %p115 = por %p113, %p114
      %p116 = scmp.ne.s32.totalorder %s107, %s108
      %p117 = scmp.eq.s32.totalorder %s29, 0
      %p118 = por %p116, %p117
      %p119 = scmp.ne.s32.totalorder %s107, %s108
      %p120 = scmp.eq.s32.totalorder %s30, 1
      %p121 = por %p119, %p120
      %p123 = scmp.ne.s32.totalorder %s108, %s122
      %p124 = scmp.eq.s32.totalorder %s30, 0
      %p125 = por %p123, %p124
      %s127 = sadd.s32 %s126, 1
      %p130 = scmp.eq.s32.totalorder %s24, 1
      %p131 = scmp.ne.s32.totalorder %s126, %s128
      %p132 = scmp.eq.s32.totalorder %s24, 0
      %p133 = por %p131, %p132
      %p134 = scmp.ne.s32.totalorder %s126, %s128
      %p135 = scmp.eq.s32.totalorder %s29, 1
      %p136 = por %p134, %p135
      %p137 = scmp.ne.s32.totalorder %s128, %s129
      %p138 = scmp.eq.s32.totalorder %s29, 0
      %p139 = por %p137, %p138
      %p140 = scmp.ne.s32.totalorder %s128, %s129
      %p141 = scmp.eq.s32.totalorder %s30, 1
      %p142 = por %p140, %p141
      %p144 = scmp.ne.s32.totalorder %s129, %s143
      %p145 = scmp.eq.s32.totalorder %s30, 0
      %p146 = por %p144, %p145
      %s148 = sadd.s32 %s147, 1
      %p151 = scmp.eq.s32.totalorder %s24, 1
      %p152 = scmp.ne.s32.totalorder %s147, %s149
      %p153 = scmp.eq.s32.totalorder %s24, 0
      %p154 = por %p152, %p153
      %p155 = scmp.ne.s32.totalorder %s147, %s149
      %p156 = scmp.eq.s32.totalorder %s29, 1
      %p157 = por %p155, %p156
      %p158 = scmp.ne.s32.totalorder %s149, %s150
      %p159 = scmp.eq.s32.totalorder %s29, 0
      %p160 = por %p158, %p159
      %p161 = scmp.ne.s32.totalorder %s149, %s150
      %p162 = scmp.eq.s32.totalorder %s30, 1
      %p163 = por %p161, %p162
      %p165 = scmp.ne.s32.totalorder %s150, %s164
      %p166 = scmp.eq.s32.totalorder %s30, 0
      %p167 = por %p165, %p166
      %s169 = sadd.s32 %s168, 1
      %p172 = scmp.eq.s32.totalorder %s24, 1
      %p173 = scmp.ne.s32.totalorder %s168, %s170
      %p174 = scmp.eq.s32.totalorder %s24, 0
      %p175 = por %p173, %p174
      %p176 = scmp.ne.s32.totalorder %s168, %s170
      %p177 = scmp.eq.s32.totalorder %s29, 1
      %p178 = por %p176, %p177
      %p179 = scmp.ne.s32.totalorder %s170, %s171
      %p180 = scmp.eq.s32.totalorder %s29, 0
      %p181 = por %p179, %p180
      %p182 = scmp.ne.s32.totalorder %s170, %s171
      %p183 = scmp.eq.s32.totalorder %s30, 1
      %p184 = por %p182, %p183
      %p186 = scmp.ne.s32.totalorder %s171, %s185
      %p187 = scmp.eq.s32.totalorder %s30, 0
      %p188 = por %p186, %p187
      %s190 = sadd.s32 %s189, 1
      %p193 = scmp.eq.s32.totalorder %s24, 1
      %p194 = scmp.ne.s32.totalorder %s189, %s191
      %p195 = scmp.eq.s32.totalorder %s24, 0
      %p196 = por %p194, %p195
      %p197 = scmp.ne.s32.totalorder %s189, %s191
      %p198 = scmp.eq.s32.totalorder %s29, 1
      %p199 = por %p197, %p198
      %p200 = scmp.ne.s32.totalorder %s191, %s192
      %p201 = scmp.eq.s32.totalorder %s29, 0
      %p202 = por %p200, %p201
      %p203 = scmp.ne.s32.totalorder %s191, %s192
      %p204 = scmp.eq.s32.totalorder %s30, 1
      %p205 = por %p203, %p204
      %p207 = scmp.ne.s32.totalorder %s192, %s206
      %p208 = scmp.eq.s32.totalorder %s30, 0
      %p209 = por %p207, %p208
      %s211 = sadd.s32 %s210, 1
      %p214 = scmp.eq.s32.totalorder %s24, 1
      %p215 = scmp.ne.s32.totalorder %s210, %s212
      %p216 = scmp.eq.s32.totalorder %s24, 0
      %p217 = por %p215, %p216
      %p218 = scmp.ne.s32.totalorder %s210, %s212
      %p219 = scmp.eq.s32.totalorder %s29, 1
      %p220 = por %p218, %p219
      %p221 = scmp.ne.s32.totalorder %s212, %s213
      %p222 = scmp.eq.s32.totalorder %s29, 0
      %p223 = por %p221, %p222
      %p224 = scmp.ne.s32.totalorder %s212, %s213
      %p225 = scmp.eq.s32.totalorder %s30, 1
      %p226 = por %p224, %p225
      %p228 = scmp.ne.s32.totalorder %s213, %s227
      %p229 = scmp.eq.s32.totalorder %s30, 0
      %p230 = por %p228, %p229
      %s231 = ssub.s32 %s24, %s31
      %p232 = scmp.eq.s32.totalorder %s231, 0
      %s234 = sadd.s32 %s233, 1
      %s235 = scalar_select %p232, %s233, %s234
      %p238 = pneg %p232
      %p239 = scmp.eq.s32.totalorder %s24, 1
      %p240 = por %p238, %p239
      %p241 = scmp.ne.s32.totalorder %s233, %s236
      %p242 = scmp.eq.s32.totalorder %s24, 0
      %p243 = por %p241, %p242
      %p244 = scmp.ne.s32.totalorder %s233, %s236
      %p245 = scmp.eq.s32.totalorder %s29, 1
      %p246 = por %p244, %p245
      %p247 = scmp.ne.s32.totalorder %s236, %s237
      %p248 = scmp.eq.s32.totalorder %s29, 0
      %p249 = por %p247, %p248
      %p250 = scmp.ne.s32.totalorder %s236, %s237
      %p251 = scmp.eq.s32.totalorder %s30, 1
      %p252 = por %p250, %p251
      %p254 = scmp.ne.s32.totalorder %s237, %s253
      %p255 = scmp.eq.s32.totalorder %s30, 0
      %p256 = por %p254, %p255
      %p257 = scmp.le.s32.totalorder 1, %s24
      %p258 = scmp.lt.s32.totalorder %s24, 3
      %p259 = pnand %p257, %p258
      %p260 = pneg %p259
      // Predicated region
      $region9: #{tpu_custom_call.1} parent=5 // pred_check
        _
      $region10: #{tpu_custom_call.1} parent=5 // pred_check_branch
        %262 = sbr.rel (%p259) target = $region12
      $region11: #{tpu_custom_call.1} parent=5 // pred_region
        %s263 = ssub.s32 %s24, 1
        // Predicated region
        $region13: #{tpu_custom_call.1} parent=11 // pred_check
          %p264 = pneg %p97
        $region14: #{tpu_custom_call.1} parent=11 // pred_check_branch
          %266 = sbr.rel (%p264) target = $region16
        $region15: #{tpu_custom_call.1} parent=11 // pred_region
          %s268 = ssub.s32 256, 256
          %269 = vsyncadd [#allocation6], %s268
          %s270 = sshll.u32 [#allocation5], 4
          %s271 = int_to_ptr.vmem [resolvable:$true] %s270
          %276 = dma.hbm_to_vmem [thread:$0]  %s2, 256, %s271, [#allocation6], 128, 128, 8
        $region16: #{tpu_custom_call.1} parent=11 // pred_fallthru
          _
        // Predicated region
        $region17: #{tpu_custom_call.1} parent=11 // pred_check
          %p277 = pneg %p118
        $region18: #{tpu_custom_call.1} parent=11 // pred_check_branch
          %279 = sbr.rel (%p277) target = $region20
        $region19: #{tpu_custom_call.1} parent=11 // pred_region
          %s281 = ssub.s32 64, 64
          %282 = vsyncadd [#allocation6], %s281
          %s284 = sshll.u32 [#allocation7], 4
          %s285 = int_to_ptr.vmem [resolvable:$true] %s284
          %287 = dma.hbm_to_vmem [thread:$0]  %s3, 64, %s285, [#allocation6]
        $region20: #{tpu_custom_call.1} parent=11 // pred_fallthru
          _
        // Predicated region
        $region21: #{tpu_custom_call.1} parent=11 // pred_check
          %p288 = pneg %p139
        $region22: #{tpu_custom_call.1} parent=11 // pred_check_branch
          %290 = sbr.rel (%p288) target = $region24
        $region23: #{tpu_custom_call.1} parent=11 // pred_region
          %s292 = ssub.s32 16, 16
          %293 = vsyncadd [#allocation9], %s292
          %s295 = sshll.u32 [#allocation8], 4
          %s296 = int_to_ptr.vmem [resolvable:$true] %s295
          %298 = dma.hbm_to_vmem [thread:$0]  %s4, 16, %s296, [#allocation9]
        $region24: #{tpu_custom_call.1} parent=11 // pred_fallthru
          _
        // Predicated region
        $region25: #{tpu_custom_call.1} parent=11 // pred_check
          %p299 = pneg %p160
        $region26: #{tpu_custom_call.1} parent=11 // pred_check_branch
          %301 = sbr.rel (%p299) target = $region28
        $region27: #{tpu_custom_call.1} parent=11 // pred_region
          %s303 = ssub.s32 512, 512
          %304 = vsyncadd [#allocation9], %s303
          %s305 = sshll.u32 [#allocation10], 4
          %s306 = int_to_ptr.vmem [resolvable:$true] %s305
          %311 = dma.hbm_to_vmem [thread:$0]  %s5, 512, %s306, [#allocation9], 128, 128, 8
        $region28: #{tpu_custom_call.1} parent=11 // pred_fallthru
          _
        // Predicated region
        $region29: #{tpu_custom_call.1} parent=11 // pred_check
          %p312 = pneg %p181
        $region30: #{tpu_custom_call.1} parent=11 // pred_check_branch
          %314 = sbr.rel (%p312) target = $region32
        $region31: #{tpu_custom_call.1} parent=11 // pred_region
          %s316 = ssub.s32 16, 16
          %317 = vsyncadd [#allocation12], %s316
          %s319 = sshll.u32 [#allocation11], 4
          %s320 = int_to_ptr.vmem [resolvable:$true] %s319
          %322 = dma.hbm_to_vmem [thread:$0]  %s6, 16, %s320, [#allocation12]
        $region32: #{tpu_custom_call.1} parent=11 // pred_fallthru
          _
        // Predicated region
        $region33: #{tpu_custom_call.1} parent=11 // pred_check
          %p323 = pneg %p202
        $region34: #{tpu_custom_call.1} parent=11 // pred_check_branch
          %325 = sbr.rel (%p323) target = $region36
        $region35: #{tpu_custom_call.1} parent=11 // pred_region
          _
        $region36: #{tpu_custom_call.1} parent=11 // pred_fallthru
          _
        // Predicated region
        $region37: #{tpu_custom_call.1} parent=11 // pred_check
          %p326 = pneg %p223
        $region38: #{tpu_custom_call.1} parent=11 // pred_check_branch
          %328 = sbr.rel (%p326) target = $region40
        $region39: #{tpu_custom_call.1} parent=11 // pred_region
          _
        $region40: #{tpu_custom_call.1} parent=11 // pred_fallthru
          _
      $region12: #{tpu_custom_call.1} parent=5 // pred_fallthru
        _
      %p329 = scmp.lt.s32.totalorder %s24, 2
      // Predicated region
      $region41: #{tpu_custom_call.1} parent=5 // pred_check
        %p330 = pneg %p329
      $region42: #{tpu_custom_call.1} parent=5 // pred_check_branch
        %332 = sbr.rel (%p330) target = $region44
      $region43: #{tpu_custom_call.1} parent=5 // pred_region
        // Predicated region
        $region45: #{tpu_custom_call.1} parent=43 // pred_check
          %p333 = pneg %p44
        $region46: #{tpu_custom_call.1} parent=43 // pred_check_branch
          %335 = sbr.rel (%p333) target = $region48
        $region47: #{tpu_custom_call.1} parent=43 // pred_region
          %s336 = sand.u32 %s34, 1
          %s337 = scalar_lea.sflag [#allocation3], %s336
          %s338 = sand.u32 %s34, 1
          %s339 = smul.addr %s338, 8
          %s340 = scalar_lea.vmem [#allocation2], %s339
          %s342 = ssub.s32 128, 128
          %343 = vsyncadd %s337, %s342
          %s344 = smul.addr %s24, 128
          %s345 = scalar_lea.hbm %s0, %s344
          %s347 = sshll.u32 %s340, 4
          %s348 = int_to_ptr.vmem [resolvable:$true] %s347
          %350 = dma.hbm_to_vmem [thread:$0]  %s345, 128, %s348, %s337
        $region48: #{tpu_custom_call.1} parent=43 // pred_fallthru
          _
        // Predicated region
        $region49: #{tpu_custom_call.1} parent=43 // pred_check
          %p351 = pneg %p70
        $region50: #{tpu_custom_call.1} parent=43 // pred_check_branch
          %353 = sbr.rel (%p351) target = $region52
        $region51: #{tpu_custom_call.1} parent=43 // pred_region
          %p354 = scmp.lt.s32.totalorder %s24, 1
          %s355 = scalar_select %p354, %s24, 1
          %s356 = smul.addr %s355, 8
          %s357 = scalar_lea.vmem %s1, %s356
        $region52: #{tpu_custom_call.1} parent=43 // pred_fallthru
          _
      $region44: #{tpu_custom_call.1} parent=5 // pred_fallthru
        _
      %p358 = scmp.le.s32.totalorder 1, %s24
      %p359 = scmp.lt.s32.totalorder %s24, 3
      %p360 = pnand %p358, %p359
      %p361 = pneg %p360
      // Predicated region
      $region53: #{tpu_custom_call.1} parent=5 // pred_check
        _
      $region54: #{tpu_custom_call.1} parent=5 // pred_check_branch
        %363 = sbr.rel (%p360) target = $region56
      $region55: #{tpu_custom_call.1} parent=5 // pred_region
        %s364 = ssub.s32 %s24, 1
        %s365 = sand.u32 %s37, 1
        %s366 = scalar_lea.sflag [#allocation3], %s365
        %s367 = sand.u32 %s37, 1
        %s368 = smul.addr %s367, 8
        %s369 = scalar_lea.vmem [#allocation2], %s368
        // Predicated region
        $region57: #{tpu_custom_call.1} parent=55 // pred_check
          %p370 = pneg %p50
        $region58: #{tpu_custom_call.1} parent=55 // pred_check_branch
          %372 = sbr.rel (%p370) target = $region60
        $region59: #{tpu_custom_call.1} parent=55 // pred_region
          %373 = dma.done %s366, 128
        $region60: #{tpu_custom_call.1} parent=55 // pred_fallthru
          _
        // Predicated region
        $region61: #{tpu_custom_call.1} parent=55 // pred_check
          %p374 = pneg %p97
        $region62: #{tpu_custom_call.1} parent=55 // pred_check_branch
          %376 = sbr.rel (%p374) target = $region64
        $region63: #{tpu_custom_call.1} parent=55 // pred_region
          %377 = dma.done [#allocation6], 256
        $region64: #{tpu_custom_call.1} parent=55 // pred_fallthru
          _
        // Predicated region
        $region65: #{tpu_custom_call.1} parent=55 // pred_check
          %p378 = pneg %p118
        $region66: #{tpu_custom_call.1} parent=55 // pred_check_branch
          %380 = sbr.rel (%p378) target = $region68
        $region67: #{tpu_custom_call.1} parent=55 // pred_region
          %381 = dma.done [#allocation6], 64
        $region68: #{tpu_custom_call.1} parent=55 // pred_fallthru
          _
        // Predicated region
        $region69: #{tpu_custom_call.1} parent=55 // pred_check
          %p382 = pneg %p139
        $region70: #{tpu_custom_call.1} parent=55 // pred_check_branch
          %384 = sbr.rel (%p382) target = $region72
        $region71: #{tpu_custom_call.1} parent=55 // pred_region
          %385 = dma.done [#allocation9], 16
        $region72: #{tpu_custom_call.1} parent=55 // pred_fallthru
          _
        // Predicated region
        $region73: #{tpu_custom_call.1} parent=55 // pred_check
          %p386 = pneg %p160
        $region74: #{tpu_custom_call.1} parent=55 // pred_check_branch
          %388 = sbr.rel (%p386) target = $region76
        $region75: #{tpu_custom_call.1} parent=55 // pred_region
          %389 = dma.done [#allocation9], 512
        $region76: #{tpu_custom_call.1} parent=55 // pred_fallthru
          _
        // Predicated region
        $region77: #{tpu_custom_call.1} parent=55 // pred_check
          %p390 = pneg %p181
        $region78: #{tpu_custom_call.1} parent=55 // pred_check_branch
          %392 = sbr.rel (%p390) target = $region80
        $region79: #{tpu_custom_call.1} parent=55 // pred_region
          %393 = dma.done [#allocation12], 16
        $region80: #{tpu_custom_call.1} parent=55 // pred_fallthru
          _
        %s394 = sand.u32 %s37, 1
        %s395 = scalar_lea.sflag [#allocation3], %s394
        %s396 = sand.u32 %s37, 1
        %s397 = smul.addr %s396, 8
        %s398 = scalar_lea.vmem [#allocation2], %s397
        %p399 = pneg %p50
        %p400 = pneg %p47
        %p401 = scmp.lt.s32.totalorder %s29, 1
        %s402 = scalar_select %p401, %s29, 1
        %s403 = smul.addr %s402, 8
        %s404 = scalar_lea.vmem %s1, %s403
        %p405 = pneg %p76
        %p406 = pneg %p73
        %p407 = pneg %p97
        %p408 = pneg %p94
        %p409 = pneg %p118
        %p410 = pneg %p115
        %p411 = pneg %p139
        %p412 = pneg %p136
        %p413 = pneg %p160
        %p414 = pneg %p157
        %p415 = pneg %p181
        %p416 = pneg %p178
        %p417 = pneg %p202
        %p418 = pneg %p199
        %p419 = pneg %p223
        %p420 = pneg %p220
        %p421 = pneg %p249
        %p422 = pneg %p246
        %s423 = sand.u32 %s236, 1
        %s424 = scalar_lea.sflag [#allocation4], %s423
        %s425 = sand.u32 %s236, 1
        %s426 = smul.addr %s425, 8
        %s427 = scalar_lea.vmem [#allocation13], %s426
        %p428 = scmp.lt.s32.totalorder %s29, 1
        %s429 = scalar_select %p428, %s29, 1
        %s430 = smul.addr %s429, 8
        %s431 = scalar_lea.vmem %s1, %s430
        %v432 = vld [vmem:[%s369] sm:$0xff]
        %v433 = vld [vmem:[#allocation5] sm:$0xff]
        %v434 = vld [vmem:[#allocation5 + $0x8] sm:$0xff]
        %v435 = vld [vmem:[%s431] sm:$0xff]
        %v436 = vld [vmem:[#allocation7] sm:$0xf]
        %vm437 = vcmask 31744
        %v439 = vsel %vm437, %v435, 0
        %vm441 = vcmask 1043456
        %v443 = vsel %vm441, %v436, 0
        %445 = vmatprep.subr.mxu0 0.0
        %446 = vmatpush1.msra.mxu0 0.0
        %447 = vmatprep.subr.mxu0 0.0
        %448 = vmatpush1.msra.mxu0 0.0
        %449 = vmatprep.subr.mxu0 0.0
        %450 = vmatpush1.msra.mxu0 0.0
        %451 = vmatprep.subr.mxu0 0.0
        %452 = vmatpush1.msra.mxu0 0.0
        %453 = vmatprep.subr.mxu0 0.0
        %454 = vmatpush1.msra.mxu0 0.0
        %455 = vmatprep.subr.mxu0 0.0
        %456 = vmatpush1.msra.mxu0 0.0
        %457 = vmatprep.subr.mxu0 0.0
        %458 = vmatpush1.msra.mxu0 0.0
        %459 = vmatprep.subr.mxu0 0.0
        %460 = vmatpush1.msra.mxu0 0.0
        %461 = vmatprep.subr.mxu0 0.0
        %462 = vmatpush1.msra.mxu0 0.0
        %463 = vmatprep.subr.mxu0 0.0
        %464 = vmatpush1.msra.mxu0 0.0
        %465 = vmatprep.subr.mxu0 0.0
        %466 = vmatpush1.msra.mxu0 0.0
        %467 = vmatprep.subr.mxu0 0.0
        %468 = vmatpush1.msra.mxu0 0.0
        %469 = vmatprep.subr.mxu0 0.0
        %470 = vmatpush1.msra.mxu0 0.0
        %471 = vmatprep.subr.mxu0 0.0
        %472 = vmatpush1.msra.mxu0 0.0
        %473 = vmatprep.subr.mxu0 0.0
        %474 = vmatpush1.msra.mxu0 0.0
        %475 = vmatprep.subr.mxu0 0.0
        %476 = vmatpush1.msra.mxu0 %v443
        %477 = vmatprep.subr.mxu0 0.0
        %478 = vmatpush2.msra.mxu0 0.0
        %479 = vmatprep.subr.mxu0 0.0
        %480 = vmatpush2.msra.mxu0 0.0
        %481 = vmatprep.subr.mxu0 0.0
        %482 = vmatpush2.msra.mxu0 0.0
        %483 = vmatprep.subr.mxu0 0.0
        %484 = vmatpush2.msra.mxu0 0.0
        %485 = vmatprep.subr.mxu0 0.0
        %486 = vmatpush2.msra.mxu0 0.0
        %487 = vmatprep.subr.mxu0 0.0
        %488 = vmatpush2.msra.mxu0 0.0
        %489 = vmatprep.subr.mxu0 0.0
        %490 = vmatpush2.msra.mxu0 0.0
        %491 = vmatprep.subr.mxu0 0.0
        %492 = vmatpush2.msra.mxu0 0.0
        %493 = vmatprep.subr.mxu0 0.0
        %494 = vmatpush2.msra.mxu0 0.0
        %495 = vmatprep.subr.mxu0 0.0
        %496 = vmatpush2.msra.mxu0 0.0
        %497 = vmatprep.subr.mxu0 0.0
        %498 = vmatpush2.msra.mxu0 0.0
        %499 = vmatprep.subr.mxu0 0.0
        %500 = vmatpush2.msra.mxu0 0.0
        %501 = vmatprep.subr.mxu0 0.0
        %502 = vmatpush2.msra.mxu0 0.0
        %503 = vmatprep.subr.mxu0 0.0
        %504 = vmatpush2.msra.mxu0 0.0
        %505 = vmatprep.subr.mxu0 0.0
        %506 = vmatpush2.msra.mxu0 0.0
        %507 = vmatprep.subr.mxu0 0.0
        %508 = vmatpush2.msra.mxu0 0.0
        %509 = vmatprep.mubr.f32.mxu0 0.0
        %510 = vmatmul.mubr.f32.gmra.mxu0 %v439
        %v511 = vpop.f32.mrf.mxu0
        %v512 = vadd.f32 0.0, %v511
        %v513 = vpop.f32.mrf.mxu0
        %514 = vdwg.mxu0
        %vm515 = vcmask 130048
        %v517 = vsel %vm515, %v432, 0
        %519 = vmatprep.subr.mxu0 0.0
        %520 = vmatpush1.msra.mxu0 0.0
        %521 = vmatprep.subr.mxu0 0.0
        %522 = vmatpush1.msra.mxu0 0.0
        %523 = vmatprep.subr.mxu0 0.0
        %524 = vmatpush1.msra.mxu0 0.0
        %525 = vmatprep.subr.mxu0 0.0
        %526 = vmatpush1.msra.mxu0 0.0
        %527 = vmatprep.subr.mxu0 0.0
        %528 = vmatpush1.msra.mxu0 0.0
        %529 = vmatprep.subr.mxu0 0.0
        %530 = vmatpush1.msra.mxu0 0.0
        %531 = vmatprep.subr.mxu0 0.0
        %532 = vmatpush1.msra.mxu0 0.0
        %533 = vmatprep.subr.mxu0 0.0
        %534 = vmatpush1.msra.mxu0 0.0
        %535 = vmatprep.subr.mxu0 0.0
        %536 = vmatpush1.msra.mxu0 0.0
        %537 = vmatprep.subr.mxu0 0.0
        %538 = vmatpush1.msra.mxu0 0.0
        %539 = vmatprep.subr.mxu0 0.0
        %540 = vmatpush1.msra.mxu0 0.0
        %541 = vmatprep.subr.mxu0 0.0
        %542 = vmatpush1.msra.mxu0 0.0
        %543 = vmatprep.subr.mxu0 0.0
        %544 = vmatpush1.msra.mxu0 0.0
        %545 = vmatprep.subr.mxu0 0.0
        %546 = vmatpush1.msra.mxu0 0.0
        %547 = vmatprep.subr.mxu0 0.0
        %548 = vmatpush1.msra.mxu0 %v434
        %549 = vmatprep.subr.mxu0 0.0
        %550 = vmatpush1.msra.mxu0 %v433
        %551 = vmatprep.subr.mxu0 0.0
        %552 = vmatpush2.msra.mxu0 0.0
        %553 = vmatprep.subr.mxu0 0.0
        %554 = vmatpush2.msra.mxu0 0.0
        %555 = vmatprep.subr.mxu0 0.0
        %556 = vmatpush2.msra.mxu0 0.0
        %557 = vmatprep.subr.mxu0 0.0
        %558 = vmatpush2.msra.mxu0 0.0
        %559 = vmatprep.subr.mxu0 0.0
        %560 = vmatpush2.msra.mxu0 0.0
        %561 = vmatprep.subr.mxu0 0.0
        %562 = vmatpush2.msra.mxu0 0.0
        %563 = vmatprep.subr.mxu0 0.0
        %564 = vmatpush2.msra.mxu0 0.0
        %565 = vmatprep.subr.mxu0 0.0
        %566 = vmatpush2.msra.mxu0 0.0
        %567 = vmatprep.subr.mxu0 0.0
        %568 = vmatpush2.msra.mxu0 0.0
        %569 = vmatprep.subr.mxu0 0.0
        %570 = vmatpush2.msra.mxu0 0.0
        %571 = vmatprep.subr.mxu0 0.0
        %572 = vmatpush2.msra.mxu0 0.0
        %573 = vmatprep.subr.mxu0 0.0
        %574 = vmatpush2.msra.mxu0 0.0
        %575 = vmatprep.subr.mxu0 0.0
        %576 = vmatpush2.msra.mxu0 0.0
        %577 = vmatprep.subr.mxu0 0.0
        %578 = vmatpush2.msra.mxu0 0.0
        %579 = vmatprep.subr.mxu0 0.0
        %580 = vmatpush2.msra.mxu0 0.0
        %581 = vmatprep.subr.mxu0 0.0
        %582 = vmatpush2.msra.mxu0 0.0
        %583 = vmatprep.mubr.f32.mxu0 0.0
        %584 = vmatmul.mubr.f32.gmra.mxu0 %v517
        %v585 = vpop.f32.mrf.mxu0
        %v586 = vadd.f32 %v512, %v585
        %v587 = vpop.f32.mrf.mxu0
        %588 = vdwg.mxu0
        %v589 = vld [vmem:[#allocation8] sm:$0x1]
        %v591 = vlaneseq
        %v592 = vshrl.u32 %v591, 7
        %v593 = vsub.s32 0, %v592
        %v594 = vrot.slane %v589, %v593
        %v596 = vadd.f32 %v586, %v594
        %v597 = vmax.f32 %v596, 0.0
        %v598 = vld [vmem:[#allocation10] sm:$0xff]
        %v599 = vld [vmem:[#allocation10 + $0x8] sm:$0xff]
        %v600 = vld [vmem:[#allocation10 + $0x10] sm:$0xff]
        %v601 = vld [vmem:[#allocation10 + $0x18] sm:$0xff]
        %v602 = vld [vmem:[#allocation11] sm:$0x1]
        %v604 = vlaneseq
        %v605 = vshrl.u32 %v604, 7
        %v606 = vsub.s32 0, %v605
        %v607 = vrot.slane %v602, %v606
        %vm609 = vcmask 261120
        %v611 = vsel %vm609, %v597, 0
        %613 = vmatprep.subr.mxu0 0.0
        %614 = vmatpush1.msra.mxu0 0.0
        %615 = vmatprep.subr.mxu0 0.0
        %616 = vmatpush1.msra.mxu0 0.0
        %617 = vmatprep.subr.mxu0 0.0
        %618 = vmatpush1.msra.mxu0 0.0
        %619 = vmatprep.subr.mxu0 0.0
        %620 = vmatpush1.msra.mxu0 0.0
        %621 = vmatprep.subr.mxu0 0.0
        %622 = vmatpush1.msra.mxu0 0.0
        %623 = vmatprep.subr.mxu0 0.0
        %624 = vmatpush1.msra.mxu0 0.0
        %625 = vmatprep.subr.mxu0 0.0
        %626 = vmatpush1.msra.mxu0 0.0
        %627 = vmatprep.subr.mxu0 0.0
        %628 = vmatpush1.msra.mxu0 0.0
        %629 = vmatprep.subr.mxu0 0.0
        %630 = vmatpush1.msra.mxu0 0.0
        %631 = vmatprep.subr.mxu0 0.0
        %632 = vmatpush1.msra.mxu0 0.0
        %633 = vmatprep.subr.mxu0 0.0
        %634 = vmatpush1.msra.mxu0 0.0
        %635 = vmatprep.subr.mxu0 0.0
        %636 = vmatpush1.msra.mxu0 0.0
        %637 = vmatprep.subr.mxu0 0.0
        %638 = vmatpush1.msra.mxu0 %v601
        %639 = vmatprep.subr.mxu0 0.0
        %640 = vmatpush1.msra.mxu0 %v600
        %641 = vmatprep.subr.mxu0 0.0
        %642 = vmatpush1.msra.mxu0 %v599
        %643 = vmatprep.subr.mxu0 0.0
        %644 = vmatpush1.msra.mxu0 %v598
        %645 = vmatprep.subr.mxu0 0.0
        %646 = vmatpush2.msra.mxu0 0.0
        %647 = vmatprep.subr.mxu0 0.0
        %648 = vmatpush2.msra.mxu0 0.0
        %649 = vmatprep.subr.mxu0 0.0
        %650 = vmatpush2.msra.mxu0 0.0
        %651 = vmatprep.subr.mxu0 0.0
        %652 = vmatpush2.msra.mxu0 0.0
        %653 = vmatprep.subr.mxu0 0.0
        %654 = vmatpush2.msra.mxu0 0.0
        %655 = vmatprep.subr.mxu0 0.0
        %656 = vmatpush2.msra.mxu0 0.0
        %657 = vmatprep.subr.mxu0 0.0
        %658 = vmatpush2.msra.mxu0 0.0
        %659 = vmatprep.subr.mxu0 0.0
        %660 = vmatpush2.msra.mxu0 0.0
        %661 = vmatprep.subr.mxu0 0.0
        %662 = vmatpush2.msra.mxu0 0.0
        %663 = vmatprep.subr.mxu0 0.0
        %664 = vmatpush2.msra.mxu0 0.0
        %665 = vmatprep.subr.mxu0 0.0
        %666 = vmatpush2.msra.mxu0 0.0
        %667 = vmatprep.subr.mxu0 0.0
        %668 = vmatpush2.msra.mxu0 0.0
        %669 = vmatprep.subr.mxu0 0.0
        %670 = vmatpush2.msra.mxu0 0.0
        %671 = vmatprep.subr.mxu0 0.0
        %672 = vmatpush2.msra.mxu0 0.0
        %673 = vmatprep.subr.mxu0 0.0
        %674 = vmatpush2.msra.mxu0 0.0
        %675 = vmatprep.subr.mxu0 0.0
        %676 = vmatpush2.msra.mxu0 0.0
        %677 = vmatprep.mubr.f32.mxu0 0.0
        %678 = vmatmul.mubr.f32.gmra.mxu0 %v611
        %v679 = vpop.f32.mrf.mxu0
        %v680 = vadd.f32 %v607, %v679
        %v681 = vpop.f32.mrf.mxu0
        %682 = vdwg.mxu0
        %v683 = vld [vmem:[%s7] sm:$0xff]
        %v684 = vld [vmem:[%s7 + $0x8] sm:$0xff]
        %v685 = vld [vmem:[%s7 + $0x10] sm:$0xff]
        %v686 = vld [vmem:[%s7 + $0x18] sm:$0xff]
        %v687 = vld [vmem:[%s8] sm:$0x1]
        %v689 = vlaneseq
        %v690 = vshrl.u32 %v689, 7
        %v691 = vsub.s32 0, %v690
        %v692 = vrot.slane %v687, %v691
        %v695 = vsel %vm609, %v680, 0
        %697 = vmatprep.subr.mxu0 0.0
        %698 = vmatpush1.msra.mxu0 0.0
        %699 = vmatprep.subr.mxu0 0.0
        %700 = vmatpush1.msra.mxu0 0.0
        %701 = vmatprep.subr.mxu0 0.0
        %702 = vmatpush1.msra.mxu0 0.0
        %703 = vmatprep.subr.mxu0 0.0
        %704 = vmatpush1.msra.mxu0 0.0
        %705 = vmatprep.subr.mxu0 0.0
        %706 = vmatpush1.msra.mxu0 0.0
        %707 = vmatprep.subr.mxu0 0.0
        %708 = vmatpush1.msra.mxu0 0.0
        %709 = vmatprep.subr.mxu0 0.0
        %710 = vmatpush1.msra.mxu0 0.0
        %711 = vmatprep.subr.mxu0 0.0
        %712 = vmatpush1.msra.mxu0 0.0
        %713 = vmatprep.subr.mxu0 0.0
        %714 = vmatpush1.msra.mxu0 0.0
        %715 = vmatprep.subr.mxu0 0.0
        %716 = vmatpush1.msra.mxu0 0.0
        %717 = vmatprep.subr.mxu0 0.0
        %718 = vmatpush1.msra.mxu0 0.0
        %719 = vmatprep.subr.mxu0 0.0
        %720 = vmatpush1.msra.mxu0 0.0
        %721 = vmatprep.subr.mxu0 0.0
        %722 = vmatpush1.msra.mxu0 %v686
        %723 = vmatprep.subr.mxu0 0.0
        %724 = vmatpush1.msra.mxu0 %v685
        %725 = vmatprep.subr.mxu0 0.0
        %726 = vmatpush1.msra.mxu0 %v684
        %727 = vmatprep.subr.mxu0 0.0
        %728 = vmatpush1.msra.mxu0 %v683
        %729 = vmatprep.subr.mxu0 0.0
        %730 = vmatpush2.msra.mxu0 0.0
        %731 = vmatprep.subr.mxu0 0.0
        %732 = vmatpush2.msra.mxu0 0.0
        %733 = vmatprep.subr.mxu0 0.0
        %734 = vmatpush2.msra.mxu0 0.0
        %735 = vmatprep.subr.mxu0 0.0
        %736 = vmatpush2.msra.mxu0 0.0
        %737 = vmatprep.subr.mxu0 0.0
        %738 = vmatpush2.msra.mxu0 0.0
        %739 = vmatprep.subr.mxu0 0.0
        %740 = vmatpush2.msra.mxu0 0.0
        %741 = vmatprep.subr.mxu0 0.0
        %742 = vmatpush2.msra.mxu0 0.0
        %743 = vmatprep.subr.mxu0 0.0
        %744 = vmatpush2.msra.mxu0 0.0
        %745 = vmatprep.subr.mxu0 0.0
        %746 = vmatpush2.msra.mxu0 0.0
        %747 = vmatprep.subr.mxu0 0.0
        %748 = vmatpush2.msra.mxu0 0.0
        %749 = vmatprep.subr.mxu0 0.0
        %750 = vmatpush2.msra.mxu0 0.0
        %751 = vmatprep.subr.mxu0 0.0
        %752 = vmatpush2.msra.mxu0 0.0
        %753 = vmatprep.subr.mxu0 0.0
        %754 = vmatpush2.msra.mxu0 0.0
        %755 = vmatprep.subr.mxu0 0.0
        %756 = vmatpush2.msra.mxu0 0.0
        %757 = vmatprep.subr.mxu0 0.0
        %758 = vmatpush2.msra.mxu0 0.0
        %759 = vmatprep.subr.mxu0 0.0
        %760 = vmatpush2.msra.mxu0 0.0
        %761 = vmatprep.mubr.f32.mxu0 0.0
        %762 = vmatmul.mubr.f32.gmra.mxu0 %v695
        %v763 = vpop.f32.mrf.mxu0
        %v764 = vadd.f32 %v692, %v763
        %v765 = vpop.f32.mrf.mxu0
        %766 = vdwg.mxu0
        %767 = vst [vmem:[%s427] sm:$0xff] %v764
        %s768 = sand.u32 %s236, 1
        %s769 = scalar_lea.sflag [#allocation4], %s768
        %s770 = sand.u32 %s236, 1
        %s771 = smul.addr %s770, 8
        %s772 = scalar_lea.vmem [#allocation13], %s771
        // Predicated region
        $region81: #{tpu_custom_call.1} parent=55 // pred_check
          %p773 = pneg %p246
        $region82: #{tpu_custom_call.1} parent=55 // pred_check_branch
          %775 = sbr.rel (%p773) target = $region84
        $region83: #{tpu_custom_call.1} parent=55 // pred_region
          %s777 = ssub.s32 128, 128
          %778 = vsyncadd %s769, %s777
          %s779 = smul.addr %s29, 128
          %s780 = scalar_lea.hbm %s9, %s779
          %s782 = sshll.u32 %s772, 4
          %s783 = int_to_ptr.vmem [resolvable:$true] %s782
          %785 = dma.vmem_to_hbm [thread:$0]  %s783, 128, %s780, %s769
        $region84: #{tpu_custom_call.1} parent=55 // pred_fallthru
          _
      $region56: #{tpu_custom_call.1} parent=5 // pred_fallthru
        _
      %p786 = scmp.le.s32.totalorder 2, %s24
      // Predicated region
      $region85: #{tpu_custom_call.1} parent=5 // pred_check
        %p787 = pneg %p786
      $region86: #{tpu_custom_call.1} parent=5 // pred_check_branch
        %789 = sbr.rel (%p787) target = $region88
      $region87: #{tpu_custom_call.1} parent=5 // pred_region
        %s790 = ssub.s32 %s24, 2
        // Predicated region
        $region89: #{tpu_custom_call.1} parent=87 // pred_check
          %p791 = pneg %p252
        $region90: #{tpu_custom_call.1} parent=87 // pred_check_branch
          %793 = sbr.rel (%p791) target = $region92
        $region91: #{tpu_custom_call.1} parent=87 // pred_region
          %s794 = sand.u32 %s237, 1
          %s795 = scalar_lea.sflag [#allocation4], %s794
          %s796 = sand.u32 %s237, 1
          %s797 = smul.addr %s796, 8
          %s798 = scalar_lea.vmem [#allocation13], %s797
          %799 = dma.done %s795, 128
        $region92: #{tpu_custom_call.1} parent=87 // pred_fallthru
          _
      $region88: #{tpu_custom_call.1} parent=5 // pred_fallthru
        _
    $region6: #{tpu_custom_call.1} parent=1 // loop_footer
      %s28 = sadd.s32 1, %s24
    $region7: #{tpu_custom_call.1} parent=1 // loop_footer_branch
      %23 = sbr.rel target = $region3
    $region8: #{tpu_custom_call.1} parent=1 // loop_exit
      _
    %800 = vsyncpa [#allocation3], 1
    %s801 = scalar_lea.sflag [#allocation3], 1
    %802 = vsyncpa %s801, 1
    %803 = vsyncpa [#allocation6], 1
    %804 = vsyncpa [#allocation9], 1
    %805 = vsyncpa [#allocation12], 1
    %806 = vsyncpa [#allocation4], 1
    %s807 = scalar_lea.sflag [#allocation4], 1
    %808 = vsyncpa %s807, 1

</llo_original>
